<compile_context>
chip_gen: v6e
topology: v6e:2x2x1
jax: 0.10.0
libtpu: 0.0.40
codegen_flags: <defaults>
</compile_context>

<pallas_src>
import functools
import math

import numpy as np
import jax
import jax.numpy as jnp
from jax.experimental import pallas as pl
from jax.experimental.pallas import tpu as pltpu

DELTA = 0.001


def _round_up(x, m):
    return ((x + m - 1) // m) * m


# ---------------------------------------------------------------------------
# Gabor filter bank: plain jnp.  288 elements as a separate pallas_call is
# pure launch overhead + an HBM round trip; as XLA it fuses into the graph.
# ---------------------------------------------------------------------------
def gabor_weights(freq, theta, sigma, psi, xgrid, ygrid):
    f32 = jnp.float32
    x = xgrid.astype(f32)[None, None]                 # (1, 1, KH, KW)
    y = ygrid.astype(f32)[None, None]
    ct = jnp.cos(theta).astype(f32)[:, :, None, None]
    st = jnp.sin(theta).astype(f32)[:, :, None, None]
    sig = sigma.astype(f32)[:, :, None, None]
    f = freq.astype(f32)[:, :, None, None]
    ps = psi.astype(f32)[:, :, None, None]
    rotx = x * ct + y * st
    roty = -x * st + y * ct
    g = jnp.exp(-0.5 * ((rotx ** 2 + roty ** 2) / (sig + DELTA) ** 2))
    g = g * jnp.cos(f * rotx + ps)
    g = g / (2.0 * math.pi * sig ** 2)
    return g                                          # (O, I, KH, KW) float32


def _gabor_weights_numpy(freq, theta, sigma, psi, xg, yg):
    """Independent per-(o,i) numpy loop mirroring PyTorch calculate_weights()."""
    O, I = freq.shape
    out = np.zeros((O, I) + xg.shape, np.float32)
    for i in range(O):
        for j in range(I):
            s, f, t, p = sigma[i, j], freq[i, j], theta[i, j], psi[i, j]
            rotx = xg * np.cos(t) + yg * np.sin(t)
            roty = -xg * np.sin(t) + yg * np.cos(t)
            g = np.exp(-0.5 * ((rotx ** 2 + roty ** 2) / (s + DELTA) ** 2))
            g = g * np.cos(f * rotx + p)
            g = g / (2.0 * math.pi * s ** 2)
            out[i, j] = g
    return out


# ---------------------------------------------------------------------------
# Conv kernel: per-sample grid step; in-kernel spatial tiling + single
# K = C*KH*KW im2col matmul per tile.
# ---------------------------------------------------------------------------
def _gabor_conv_kernel(x_ref, w_ref, o_ref, xbf_ref, col_ref, *,
                       W, KH, KW, HW, tile_p):
    # x_ref:   (C, HW)         input plane for this sample, native dtype
    # w_ref:   (O, KH*KW*C)    bf16 weights, (kh, kw, c)-ordered K axis
    # o_ref:   (O, OHWp)       output plane (stride-W rows), out_dtype
    # xbf_ref: (C, HWp)        bf16 plane scratch with zeroed tail
    # col_ref: (KH*KW*C, tile_p) bf16 im2col scratch, reused every tile
    C = x_ref.shape[0]
    HWp = xbf_ref.shape[1]
    OHWp = o_ref.shape[1]
    n_tiles = OHWp // tile_p

    # In-kernel cast + tail zero-pad: HBM only ever sees the raw input.
    xbf_ref[:, :HW] = x_ref[...].astype(jnp.bfloat16)
    if HWp > HW:
        xbf_ref[:, HW:] = jnp.zeros((C, HWp - HW), jnp.bfloat16)

    # Static tile loop (offsets are compile-time constants).  The shifted tap
    # slices are made explicit as copies into the im2col scratch, shifting the
    # small C-row side; writes/reads on col_ref serialize iterations so the
    # working set stays one tile deep.
    for t in range(n_tiles):
        base = t * tile_p
        for kh in range(KH):
            for kw in range(KW):
                k = kh * KW + kw
                off = base + kh * W + kw            # contiguous tap window
                col_ref[k * C:(k + 1) * C, :] = xbf_ref[:, off:off + tile_p]
        # One MXU matmul per tile: (O, K) @ (K, tile_p), f32 accumulation.
        acc = jnp.dot(w_ref[...], col_ref[...],
                      preferred_element_type=jnp.float32)
        o_ref[:, base:base + tile_p] = acc.astype(o_ref.dtype)


def conv2d_gabor(x_nchw, weight_oihw, *, tile_p=512, out_dtype=jnp.bfloat16):
    """Conv2d forward: stride=1, padding=0, dilation=1, groups=1, bias=False
    (the GaborConv2d conv_layer defaults).  Output defaults to bf16 (f32
    accumulation in-kernel); pass out_dtype=jnp.float32 for a full-f32 result."""
    N, C, H, W = x_nchw.shape
    O, Cw, KH, KW = weight_oihw.shape
    assert C == Cw, (C, Cw)
    OH, OW = H - KH + 1, W - KW + 1
    KK = KH * KW
    HW = H * W
    OHW = OH * W                       # output rows keep stride W; junk cols dropped

    tile_p = max(128, min(_round_up(tile_p, 128), _round_up(OHW, 128)))
    n_tiles = pl.cdiv(OHW, tile_p)
    OHWp = n_tiles * tile_p            # lane-dense padded output width
    halo = (KH - 1) * W + (KW - 1)
    HWp = _round_up(OHWp + halo, 128)  # bf16 plane scratch width (zero tail)

    x_flat = x_nchw.reshape(N, C, HW)  # native dtype, unpadded; cast in-kernel
    # (O, C, KH, KW) -> (O, KH, KW, C) -> (O, KK*C): matches im2col row order.
    w2 = jnp.transpose(weight_oihw, (0, 2, 3, 1)).reshape(O, KK * C)
    w2 = w2.astype(jnp.bfloat16)

    kernel = functools.partial(_gabor_conv_kernel, W=W, KH=KH, KW=KW, HW=HW,
                               tile_p=tile_p)

    x_bytes = x_nchw.dtype.itemsize
    o_bytes = np.dtype(out_dtype).itemsize
    vmem_need = (2 * C * HW * x_bytes        # input plane block (double-buffered)
                 + C * HWp * 2               # bf16 plane scratch
                 + KK * C * tile_p * 2       # im2col scratch
                 + 2 * O * KK * C * 2        # weights (double-buffered)
                 + 2 * O * OHWp * o_bytes    # output plane block (double-buffered)
                 + O * tile_p * 4            # per-tile f32 dot result
                 + (4 << 20))                # headroom for compiler temporaries
    # Cap well under v7x's 64 MiB physical VMEM (the old 112 MiB cap was only
    # valid on v5e/v6e's 128 MiB parts).
    vmem_limit = int(min(max(vmem_need, 16 << 20), 48 << 20))
    # TODO(synk): if vmem_need exceeds the cap (very large C*H*W), also tile the
    # channel / spatial axes across the grid instead of holding a whole plane.

    cost = pl.CostEstimate(
        flops=2 * N * O * C * KK * OH * OW,
        transcendentals=0,
        bytes_accessed=(N * C * HW * x_bytes + O * KK * C * 2
                        + N * O * OHWp * o_bytes))

    out_flat = pl.pallas_call(
        kernel,
        out_shape=jax.ShapeDtypeStruct((N, O, OHWp), out_dtype),
        grid_spec=pltpu.PrefetchScalarGridSpec(
            num_scalar_prefetch=0,
            grid=(N,),
            in_specs=[pl.BlockSpec((None, C, HW), lambda n: (n, 0, 0)),
                      pl.BlockSpec((O, KK * C), lambda n: (0, 0))],
            out_specs=pl.BlockSpec((None, O, OHWp), lambda n: (n, 0, 0)),
            scratch_shapes=[pltpu.VMEM((C, HWp), jnp.bfloat16),
                            pltpu.VMEM((KK * C, tile_p), jnp.bfloat16)]),
        compiler_params=pltpu.CompilerParams(
            dimension_semantics=("parallel",),    # megacore shards N on v7x
            vmem_limit_bytes=vmem_limit),
        cost_estimate=cost,
    )(x_flat, w2)

    # Narrow to (N, O, OH, OW).  Under jit XLA fuses this slice/reshape with the
    # consumer; callers able to consume the stride-W padded layout directly can
    # take `out_flat` as-is and skip this copy.
    out = out_flat[:, :, :OHW].reshape(N, O, OH, W)[:, :, :, :OW]
    return out


# ---------------------------------------------------------------------------
# Module-equivalent wrapper with deterministic parameter init (matches __init__)
# ---------------------------------------------------------------------------
class GaborConv2dPallas:
    def __init__(self, in_channels, out_channels, kernel_size, key):
        if isinstance(kernel_size, int):
            kernel_size = (kernel_size, kernel_size)
        self.kernel_size = kernel_size
        O, I = out_channels, in_channels
        k1, k2, k3 = jax.random.split(key, 3)
        freq_exp = jax.random.randint(k1, (O, I), 0, 5).astype(jnp.float32)
        self.freq = (math.pi / 2.0) * jnp.power(math.sqrt(2.0), -freq_exp)
        self.theta = (math.pi / 8.0) * jax.random.randint(k2, (O, I), 0, 8).astype(jnp.float32)
        self.sigma = math.pi / self.freq
        self.psi = math.pi * jax.random.uniform(k3, (O, I), dtype=jnp.float32)
        x0 = math.ceil(kernel_size[0] / 2)
        y0 = math.ceil(kernel_size[1] / 2)
        yl = jnp.linspace(-x0 + 1, x0 + 0, kernel_size[0], dtype=jnp.float32)
        xl = jnp.linspace(-y0 + 1, y0 + 0, kernel_size[1], dtype=jnp.float32)
        # torch.meshgrid default 'ij' indexing: y varies along rows, x along cols
        self.ygrid, self.xgrid = jnp.meshgrid(yl, xl, indexing="ij")
        self.training = True
        self._cached_weight = None            # eval-mode cache (is_calculated)

    def calculate_weights(self):
        return gabor_weights(self.freq, self.theta, self.sigma, self.psi,
                             self.xgrid, self.ygrid)

    def eval(self):
        self.training = False
        self._cached_weight = self.calculate_weights()   # computed once, reused
        return self

    def train(self):
        self.training = True
        self._cached_weight = None
        return self

    def __call__(self, x_nchw, *, out_dtype=jnp.bfloat16, tile_p=512):
        if (not self.training) and self._cached_weight is not None:
            w = self._cached_weight           # eval: cached filter bank
        else:
            w = self.calculate_weights()      # training: recomputed (fused XLA)
        return conv2d_gabor(x_nchw, w, tile_p=tile_p, out_dtype=out_dtype)


if __name__ == "__main__":
    key = jax.random.PRNGKey(0)
    kparam, kx = jax.random.split(key)

    N, C, O, H, W, Ksz = 2, 4, 8, 16, 16, 3
    module = GaborConv2dPallas(C, O, Ksz, kparam).eval()   # caches weights once
    x = jax.random.normal(kx, (N, C, H, W), dtype=jnp.float32)   # NCHW, like PyTorch

    # tile_p=128 exercises the multi-tile path (OHW = 14*16 = 224 -> 2 tiles).
    forward = jax.jit(functools.partial(module.__call__, tile_p=128))
    out = jax.block_until_ready(forward(x))
    assert out.shape == (N, O, H - Ksz + 1, W - Ksz + 1), out.shape

    # 1) Filter-bank check against an independent per-(o,i) numpy loop that
    #    mirrors the PyTorch calculate_weights() code path.
    w_jax = np.asarray(module.calculate_weights())
    w_np = _gabor_weights_numpy(np.asarray(module.freq), np.asarray(module.theta),
                                np.asarray(module.sigma), np.asarray(module.psi),
                                np.asarray(module.xgrid), np.asarray(module.ygrid))
    assert np.allclose(w_jax, w_np, atol=1e-5, rtol=1e-4), "gabor weight mismatch"

    # 2) Conv check against XLA's conv with the same bf16 operand rounding the
    #    kernel applies (f32 accumulation; kernel output is bf16-quantized).
    xq = x.astype(jnp.bfloat16).astype(jnp.float32)
    wq = jnp.asarray(w_jax).astype(jnp.bfloat16).astype(jnp.float32)
    ref = jax.lax.conv_general_dilated(
        xq, wq, window_strides=(1, 1), padding="VALID",
        dimension_numbers=("NCHW", "OIHW", "NCHW"))
    assert bool(jnp.allclose(out.astype(jnp.float32), ref, atol=1e-2, rtol=2e-2)), \
        "mismatch vs reference conv"

    print("KERNEL_OK")
</pallas_src>

<mosaic_0001>
module attributes {stable_mosaic.version = 11 : i64} {
  func.func @_gabor_conv_kernel(%arg0: i32, %arg1: memref<1x4x256xf32, #tpu.memory_space<vmem>>, %arg2: memref<8x36xbf16, #tpu.memory_space<vmem>>, %arg3: memref<1x8x256xbf16, #tpu.memory_space<vmem>>, %arg4: memref<4x384xbf16, #tpu.memory_space<vmem>>, %arg5: memref<36x128xbf16, #tpu.memory_space<vmem>>) attributes {dimension_semantics = [#tpu.dimension_semantics<parallel>], iteration_bounds = array<i64: 2>, scalar_prefetch = 0 : i64, scratch_operands = 2 : i64, tpu.core_type = #tpu.core_type<tc>, window_params = [{transform_indices = @transform_0, window_bounds = array<i64: 1, 4, 256>}, {pipeline_mode = #tpu.pipeline_mode<synchronous>, transform_indices = @transform_1, window_bounds = array<i64: 8, 36>}, {transform_indices = @transform_2, window_bounds = array<i64: 1, 8, 256>}]} {
    %c0 = arith.constant 0 : index
    %c0_0 = arith.constant 0 : index
    %c0_1 = arith.constant 0 : index
    %0 = vector.load %arg1[%c0, %c0_0, %c0_1] : memref<1x4x256xf32, #tpu.memory_space<vmem>>, vector<1x4x256xf32>
    %1 = vector.shape_cast %0 : vector<1x4x256xf32> to vector<4x256xf32>
    %2 = arith.truncf %1 : vector<4x256xf32> to vector<4x256xbf16>
    %c0_2 = arith.constant 0 : index
    %c0_3 = arith.constant 0 : index
    %3 = vector.load %arg4[%c0_2, %c0_3] : memref<4x384xbf16, #tpu.memory_space<vmem>>, vector<4x256xbf16>
    tpu.vector_store %arg4[%c0_2, %c0_3], %2 {strides = array<i32>} : memref<4x384xbf16, #tpu.memory_space<vmem>>, vector<4x256xbf16>,
    %cst = arith.constant 0.000000e+00 : bf16
    %4 = vector.broadcast %cst : bf16 to vector<4x128xbf16>
    %c0_4 = arith.constant 0 : index
    %c256 = arith.constant 256 : index
    %5 = vector.load %arg4[%c0_4, %c256] : memref<4x384xbf16, #tpu.memory_space<vmem>>, vector<4x128xbf16>
    tpu.vector_store %arg4[%c0_4, %c256], %4 {strides = array<i32>} : memref<4x384xbf16, #tpu.memory_space<vmem>>, vector<4x128xbf16>,
    %c0_5 = arith.constant 0 : index
    %c0_6 = arith.constant 0 : index
    %6 = vector.load %arg4[%c0_5, %c0_6] : memref<4x384xbf16, #tpu.memory_space<vmem>>, vector<4x128xbf16>
    %c0_7 = arith.constant 0 : index
    %c0_8 = arith.constant 0 : index
    %7 = vector.load %arg5[%c0_7, %c0_8] : memref<36x128xbf16, #tpu.memory_space<vmem>>, vector<4x128xbf16>
    tpu.vector_store %arg5[%c0_7, %c0_8], %6 {strides = array<i32>} : memref<36x128xbf16, #tpu.memory_space<vmem>>, vector<4x128xbf16>,
    %c0_9 = arith.constant 0 : index
    %c1 = arith.constant 1 : index
    %8 = vector.load %arg4[%c0_9, %c1] : memref<4x384xbf16, #tpu.memory_space<vmem>>, vector<4x128xbf16>
    %c4 = arith.constant 4 : index
    %c0_10 = arith.constant 0 : index
    %9 = vector.load %arg5[%c4, %c0_10] : memref<36x128xbf16, #tpu.memory_space<vmem>>, vector<4x128xbf16>
    tpu.vector_store %arg5[%c4, %c0_10], %8 {strides = array<i32>} : memref<36x128xbf16, #tpu.memory_space<vmem>>, vector<4x128xbf16>,
    %c0_11 = arith.constant 0 : index
    %c2 = arith.constant 2 : index
    %10 = vector.load %arg4[%c0_11, %c2] : memref<4x384xbf16, #tpu.memory_space<vmem>>, vector<4x128xbf16>
    %c8 = arith.constant 8 : index
    %c0_12 = arith.constant 0 : index
    %11 = vector.load %arg5[%c8, %c0_12] : memref<36x128xbf16, #tpu.memory_space<vmem>>, vector<4x128xbf16>
    tpu.vector_store %arg5[%c8, %c0_12], %10 {strides = array<i32>} : memref<36x128xbf16, #tpu.memory_space<vmem>>, vector<4x128xbf16>,
    %c0_13 = arith.constant 0 : index
    %c16 = arith.constant 16 : index
    %12 = vector.load %arg4[%c0_13, %c16] : memref<4x384xbf16, #tpu.memory_space<vmem>>, vector<4x128xbf16>
    %c12 = arith.constant 12 : index
    %c0_14 = arith.constant 0 : index
    %13 = vector.load %arg5[%c12, %c0_14] : memref<36x128xbf16, #tpu.memory_space<vmem>>, vector<4x128xbf16>
    tpu.vector_store %arg5[%c12, %c0_14], %12 {strides = array<i32>} : memref<36x128xbf16, #tpu.memory_space<vmem>>, vector<4x128xbf16>,
    %c0_15 = arith.constant 0 : index
    %c17 = arith.constant 17 : index
    %14 = vector.load %arg4[%c0_15, %c17] : memref<4x384xbf16, #tpu.memory_space<vmem>>, vector<4x128xbf16>
    %c16_16 = arith.constant 16 : index
    %c0_17 = arith.constant 0 : index
    %15 = vector.load %arg5[%c16_16, %c0_17] : memref<36x128xbf16, #tpu.memory_space<vmem>>, vector<4x128xbf16>
    tpu.vector_store %arg5[%c16_16, %c0_17], %14 {strides = array<i32>} : memref<36x128xbf16, #tpu.memory_space<vmem>>, vector<4x128xbf16>,
    %c0_18 = arith.constant 0 : index
    %c18 = arith.constant 18 : index
    %16 = vector.load %arg4[%c0_18, %c18] : memref<4x384xbf16, #tpu.memory_space<vmem>>, vector<4x128xbf16>
    %c20 = arith.constant 20 : index
    %c0_19 = arith.constant 0 : index
    %17 = vector.load %arg5[%c20, %c0_19] : memref<36x128xbf16, #tpu.memory_space<vmem>>, vector<4x128xbf16>
    tpu.vector_store %arg5[%c20, %c0_19], %16 {strides = array<i32>} : memref<36x128xbf16, #tpu.memory_space<vmem>>, vector<4x128xbf16>,
    %c0_20 = arith.constant 0 : index
    %c32 = arith.constant 32 : index
    %18 = vector.load %arg4[%c0_20, %c32] : memref<4x384xbf16, #tpu.memory_space<vmem>>, vector<4x128xbf16>
    %c24 = arith.constant 24 : index
    %c0_21 = arith.constant 0 : index
    %19 = vector.load %arg5[%c24, %c0_21] : memref<36x128xbf16, #tpu.memory_space<vmem>>, vector<4x128xbf16>
    tpu.vector_store %arg5[%c24, %c0_21], %18 {strides = array<i32>} : memref<36x128xbf16, #tpu.memory_space<vmem>>, vector<4x128xbf16>,
    %c0_22 = arith.constant 0 : index
    %c33 = arith.constant 33 : index
    %20 = vector.load %arg4[%c0_22, %c33] : memref<4x384xbf16, #tpu.memory_space<vmem>>, vector<4x128xbf16>
    %c28 = arith.constant 28 : index
    %c0_23 = arith.constant 0 : index
    %21 = vector.load %arg5[%c28, %c0_23] : memref<36x128xbf16, #tpu.memory_space<vmem>>, vector<4x128xbf16>
    tpu.vector_store %arg5[%c28, %c0_23], %20 {strides = array<i32>} : memref<36x128xbf16, #tpu.memory_space<vmem>>, vector<4x128xbf16>,
    %c0_24 = arith.constant 0 : index
    %c34 = arith.constant 34 : index
    %22 = vector.load %arg4[%c0_24, %c34] : memref<4x384xbf16, #tpu.memory_space<vmem>>, vector<4x128xbf16>
    %c32_25 = arith.constant 32 : index
    %c0_26 = arith.constant 0 : index
    %23 = vector.load %arg5[%c32_25, %c0_26] : memref<36x128xbf16, #tpu.memory_space<vmem>>, vector<4x128xbf16>
    tpu.vector_store %arg5[%c32_25, %c0_26], %22 {strides = array<i32>} : memref<36x128xbf16, #tpu.memory_space<vmem>>, vector<4x128xbf16>,
    %c0_27 = arith.constant 0 : index
    %c0_28 = arith.constant 0 : index
    %24 = vector.load %arg2[%c0_27, %c0_28] : memref<8x36xbf16, #tpu.memory_space<vmem>>, vector<8x36xbf16>
    %c0_29 = arith.constant 0 : index
    %c0_30 = arith.constant 0 : index
    %25 = vector.load %arg5[%c0_29, %c0_30] : memref<36x128xbf16, #tpu.memory_space<vmem>>, vector<36x128xbf16>
    %cst_31 = arith.constant dense<0.000000e+00> : vector<8x128xf32>
    %26 = tpu.matmul %24, %25, %cst_31 {dimension_numbers = #tpu.dot_dimension_numbers<[1], [0], [0], [1], [0, 0, 1, 1], [], []>} : vector<8x36xbf16>, vector<36x128xbf16>, vector<8x128xf32> -> vector<8x128xf32>
    %27 = arith.truncf %26 : vector<8x128xf32> to vector<8x128xbf16>
    %c0_32 = arith.constant 0 : index
    %c0_33 = arith.constant 0 : index
    %c0_34 = arith.constant 0 : index
    %28 = vector.load %arg3[%c0_32, %c0_33, %c0_34] : memref<1x8x256xbf16, #tpu.memory_space<vmem>>, vector<1x8x128xbf16>
    %29 = vector.shape_cast %28 : vector<1x8x128xbf16> to vector<8x128xbf16>
    %30 = vector.shape_cast %27 : vector<8x128xbf16> to vector<1x8x128xbf16>
    tpu.vector_store %arg3[%c0_32, %c0_33, %c0_34], %30 {strides = array<i32>} : memref<1x8x256xbf16, #tpu.memory_space<vmem>>, vector<1x8x128xbf16>,
    %c0_35 = arith.constant 0 : index
    %c128 = arith.constant 128 : index
    %31 = vector.load %arg4[%c0_35, %c128] : memref<4x384xbf16, #tpu.memory_space<vmem>>, vector<4x128xbf16>
    %c0_36 = arith.constant 0 : index
    %c0_37 = arith.constant 0 : index
    %32 = vector.load %arg5[%c0_36, %c0_37] : memref<36x128xbf16, #tpu.memory_space<vmem>>, vector<4x128xbf16>
    tpu.vector_store %arg5[%c0_36, %c0_37], %31 {strides = array<i32>} : memref<36x128xbf16, #tpu.memory_space<vmem>>, vector<4x128xbf16>,
    %c0_38 = arith.constant 0 : index
    %c129 = arith.constant 129 : index
    %33 = vector.load %arg4[%c0_38, %c129] : memref<4x384xbf16, #tpu.memory_space<vmem>>, vector<4x128xbf16>
    %c4_39 = arith.constant 4 : index
    %c0_40 = arith.constant 0 : index
    %34 = vector.load %arg5[%c4_39, %c0_40] : memref<36x128xbf16, #tpu.memory_space<vmem>>, vector<4x128xbf16>
    tpu.vector_store %arg5[%c4_39, %c0_40], %33 {strides = array<i32>} : memref<36x128xbf16, #tpu.memory_space<vmem>>, vector<4x128xbf16>,
    %c0_41 = arith.constant 0 : index
    %c130 = arith.constant 130 : index
    %35 = vector.load %arg4[%c0_41, %c130] : memref<4x384xbf16, #tpu.memory_space<vmem>>, vector<4x128xbf16>
    %c8_42 = arith.constant 8 : index
    %c0_43 = arith.constant 0 : index
    %36 = vector.load %arg5[%c8_42, %c0_43] : memref<36x128xbf16, #tpu.memory_space<vmem>>, vector<4x128xbf16>
    tpu.vector_store %arg5[%c8_42, %c0_43], %35 {strides = array<i32>} : memref<36x128xbf16, #tpu.memory_space<vmem>>, vector<4x128xbf16>,
    %c0_44 = arith.constant 0 : index
    %c144 = arith.constant 144 : index
    %37 = vector.load %arg4[%c0_44, %c144] : memref<4x384xbf16, #tpu.memory_space<vmem>>, vector<4x128xbf16>
    %c12_45 = arith.constant 12 : index
    %c0_46 = arith.constant 0 : index
    %38 = vector.load %arg5[%c12_45, %c0_46] : memref<36x128xbf16, #tpu.memory_space<vmem>>, vector<4x128xbf16>
    tpu.vector_store %arg5[%c12_45, %c0_46], %37 {strides = array<i32>} : memref<36x128xbf16, #tpu.memory_space<vmem>>, vector<4x128xbf16>,
    %c0_47 = arith.constant 0 : index
    %c145 = arith.constant 145 : index
    %39 = vector.load %arg4[%c0_47, %c145] : memref<4x384xbf16, #tpu.memory_space<vmem>>, vector<4x128xbf16>
    %c16_48 = arith.constant 16 : index
    %c0_49 = arith.constant 0 : index
    %40 = vector.load %arg5[%c16_48, %c0_49] : memref<36x128xbf16, #tpu.memory_space<vmem>>, vector<4x128xbf16>
    tpu.vector_store %arg5[%c16_48, %c0_49], %39 {strides = array<i32>} : memref<36x128xbf16, #tpu.memory_space<vmem>>, vector<4x128xbf16>,
    %c0_50 = arith.constant 0 : index
    %c146 = arith.constant 146 : index
    %41 = vector.load %arg4[%c0_50, %c146] : memref<4x384xbf16, #tpu.memory_space<vmem>>, vector<4x128xbf16>
    %c20_51 = arith.constant 20 : index
    %c0_52 = arith.constant 0 : index
    %42 = vector.load %arg5[%c20_51, %c0_52] : memref<36x128xbf16, #tpu.memory_space<vmem>>, vector<4x128xbf16>
    tpu.vector_store %arg5[%c20_51, %c0_52], %41 {strides = array<i32>} : memref<36x128xbf16, #tpu.memory_space<vmem>>, vector<4x128xbf16>,
    %c0_53 = arith.constant 0 : index
    %c160 = arith.constant 160 : index
    %43 = vector.load %arg4[%c0_53, %c160] : memref<4x384xbf16, #tpu.memory_space<vmem>>, vector<4x128xbf16>
    %c24_54 = arith.constant 24 : index
    %c0_55 = arith.constant 0 : index
    %44 = vector.load %arg5[%c24_54, %c0_55] : memref<36x128xbf16, #tpu.memory_space<vmem>>, vector<4x128xbf16>
    tpu.vector_store %arg5[%c24_54, %c0_55], %43 {strides = array<i32>} : memref<36x128xbf16, #tpu.memory_space<vmem>>, vector<4x128xbf16>,
    %c0_56 = arith.constant 0 : index
    %c161 = arith.constant 161 : index
    %45 = vector.load %arg4[%c0_56, %c161] : memref<4x384xbf16, #tpu.memory_space<vmem>>, vector<4x128xbf16>
    %c28_57 = arith.constant 28 : index
    %c0_58 = arith.constant 0 : index
    %46 = vector.load %arg5[%c28_57, %c0_58] : memref<36x128xbf16, #tpu.memory_space<vmem>>, vector<4x128xbf16>
    tpu.vector_store %arg5[%c28_57, %c0_58], %45 {strides = array<i32>} : memref<36x128xbf16, #tpu.memory_space<vmem>>, vector<4x128xbf16>,
    %c0_59 = arith.constant 0 : index
    %c162 = arith.constant 162 : index
    %47 = vector.load %arg4[%c0_59, %c162] : memref<4x384xbf16, #tpu.memory_space<vmem>>, vector<4x128xbf16>
    %c32_60 = arith.constant 32 : index
    %c0_61 = arith.constant 0 : index
    %48 = vector.load %arg5[%c32_60, %c0_61] : memref<36x128xbf16, #tpu.memory_space<vmem>>, vector<4x128xbf16>
    tpu.vector_store %arg5[%c32_60, %c0_61], %47 {strides = array<i32>} : memref<36x128xbf16, #tpu.memory_space<vmem>>, vector<4x128xbf16>,
    %c0_62 = arith.constant 0 : index
    %c0_63 = arith.constant 0 : index
    %49 = vector.load %arg2[%c0_62, %c0_63] : memref<8x36xbf16, #tpu.memory_space<vmem>>, vector<8x36xbf16>
    %c0_64 = arith.constant 0 : index
    %c0_65 = arith.constant 0 : index
    %50 = vector.load %arg5[%c0_64, %c0_65] : memref<36x128xbf16, #tpu.memory_space<vmem>>, vector<36x128xbf16>
    %cst_66 = arith.constant dense<0.000000e+00> : vector<8x128xf32>
    %51 = tpu.matmul %49, %50, %cst_66 {dimension_numbers = #tpu.dot_dimension_numbers<[1], [0], [0], [1], [0, 0, 1, 1], [], []>} : vector<8x36xbf16>, vector<36x128xbf16>, vector<8x128xf32> -> vector<8x128xf32>
    %52 = arith.truncf %51 : vector<8x128xf32> to vector<8x128xbf16>
    %c0_67 = arith.constant 0 : index
    %c0_68 = arith.constant 0 : index
    %c128_69 = arith.constant 128 : index
    %53 = vector.load %arg3[%c0_67, %c0_68, %c128_69] : memref<1x8x256xbf16, #tpu.memory_space<vmem>>, vector<1x8x128xbf16>
    %54 = vector.shape_cast %53 : vector<1x8x128xbf16> to vector<8x128xbf16>
    %55 = vector.shape_cast %52 : vector<8x128xbf16> to vector<1x8x128xbf16>
    tpu.vector_store %arg3[%c0_67, %c0_68, %c128_69], %55 {strides = array<i32>} : memref<1x8x256xbf16, #tpu.memory_space<vmem>>, vector<1x8x128xbf16>,
    return
  }
  func.func @transform_0(%arg0: i32) -> (i32, i32, i32) {
    %c0_i32 = arith.constant 0 : i32
    %c0_i32_0 = arith.constant 0 : i32
    %c0_i32_1 = arith.constant 0 : i32
    return %arg0, %c0_i32, %c0_i32_0 : i32, i32, i32
  }
  func.func @transform_1(%arg0: i32) -> (i32, i32) {
    %c0_i32 = arith.constant 0 : i32
    %c0_i32_0 = arith.constant 0 : i32
    %c0_i32_1 = arith.constant 0 : i32
    return %c0_i32, %c0_i32_0 : i32, i32
  }
  func.func @transform_2(%arg0: i32) -> (i32, i32, i32) {
    %c0_i32 = arith.constant 0 : i32
    %c0_i32_0 = arith.constant 0 : i32
    %c0_i32_1 = arith.constant 0 : i32
    return %arg0, %c0_i32, %c0_i32_0 : i32, i32, i32
  }
}

</mosaic_0001>

<llo_original>
// kernel: a_call__.1
$region0: #{a_call__.1}
  #allocation0 [shape = 'u32[]', space=smem, size = 0x4, offset = 0x4, fixed_abs, tag = 'smem constant byte address 0x4 - core index']
  #allocation1 [shape = 'u32[144,128]{1,0:T(1,128)}', space=vmem, size = 0x12000, scoped, tag = 'internal scratch']
  #allocation2 [shape = 'bf16[4,384]{1,0:T(4,128)(2,1)}', space=vmem, size = 0xc00, scoped, tag = 'scratch operand']
  #allocation3 [shape = 'bf16[36,128]{1,0:T(8,128)(2,1)}', space=vmem, size = 0x2800, scoped, tag = 'scratch operand']
  %s0 = inlined_call_operand.vmem [shape: f32[2,4,256], index: 0, kind: input, shape index: {}]
  %s1 = inlined_call_operand.vmem [shape: bf16[8,36], index: 1, kind: input, shape index: {}]
  %s2 = inlined_call_operand.vmem [shape: bf16[2,8,256], index: 2, kind: output, shape index: {}]
  %s3 = sld [smem:[#allocation0]]
  $region41: #{a_call__.1} parent=0
    _
  %s5 = ssub.s32 1, %s3
  %s6 = scalar_select 0, %s5, %s3
  loop: start=0, step=1, limit=4
  $region2: #{a_call__.1} parent=0 // loop_pre_header
    _
  $region3: #{a_call__.1} parent=0 // loop_header
    %s8 = sphi 0, %s12
    %p9 = scmp.ge.s32.totalorder %s8, 4
    %s18 = sphi 0, %s20
    %s21 = sphi 0, %s18
    %s22 = sphi 0, %s21
    %s38 = sphi 0, %s22
    %s42 = sphi 0, %s42
    %s44 = sphi 0, %s42
    %s45 = sphi 0, %s44
    %s59 = sphi 0, %s45
    %s65 = sphi 0, %s67
    %s68 = sphi 0, %s65
    %s69 = sphi 0, %s68
    %s85 = sphi 0, %s69
  $region4: #{a_call__.1} parent=0 // loop_header_branch
    %11 = sbr.rel (%p9) target = $region8
  $region5: #{a_call__.1} parent=0 // loop_body
    %s13 = ssub.s32 %s8, 1
    %s14 = ssub.s32 %s8, 2
    %s15 = sadd.s32 %s8, 1
    %s16 = ssub.s32 %s8, %s15
    %p17 = scmp.eq.s32.totalorder %s16, 0
    %s19 = sadd.s32 %s18, 1
    %s20 = scalar_select %p17, %s18, %s19
    %p23 = pneg %p17
    %p24 = scmp.eq.s32.totalorder %s8, 1
    %p25 = por %p23, %p24
    %p26 = scmp.ne.s32.totalorder %s18, %s21
    %p27 = scmp.eq.s32.totalorder %s8, 0
    %p28 = por %p26, %p27
    %p29 = scmp.ne.s32.totalorder %s18, %s21
    %p30 = scmp.eq.s32.totalorder %s13, 1
    %p31 = por %p29, %p30
    %p32 = scmp.ne.s32.totalorder %s21, %s22
    %p33 = scmp.eq.s32.totalorder %s13, 0
    %p34 = por %p32, %p33
    %p35 = scmp.ne.s32.totalorder %s21, %s22
    %p36 = scmp.eq.s32.totalorder %s14, 1
    %p37 = por %p35, %p36
    %p39 = scmp.ne.s32.totalorder %s22, %s38
    %p40 = scmp.eq.s32.totalorder %s14, 0
    %p41 = por %p39, %p40
    %s43 = sadd.s32 %s42, 1
    %p46 = scmp.eq.s32.totalorder %s8, 1
    %p47 = scmp.ne.s32.totalorder %s42, %s44
    %p48 = scmp.eq.s32.totalorder %s8, 0
    %p49 = por %p47, %p48
    %p50 = scmp.ne.s32.totalorder %s42, %s44
    %p51 = scmp.eq.s32.totalorder %s13, 1
    %p52 = por %p50, %p51
    %p53 = scmp.ne.s32.totalorder %s44, %s45
    %p54 = scmp.eq.s32.totalorder %s13, 0
    %p55 = por %p53, %p54
    %p56 = scmp.ne.s32.totalorder %s44, %s45
    %p57 = scmp.eq.s32.totalorder %s14, 1
    %p58 = por %p56, %p57
    %p60 = scmp.ne.s32.totalorder %s45, %s59
    %p61 = scmp.eq.s32.totalorder %s14, 0
    %p62 = por %p60, %p61
    %s63 = ssub.s32 %s8, %s15
    %p64 = scmp.eq.s32.totalorder %s63, 0
    %s66 = sadd.s32 %s65, 1
    %s67 = scalar_select %p64, %s65, %s66
    %p70 = pneg %p64
    %p71 = scmp.eq.s32.totalorder %s8, 1
    %p72 = por %p70, %p71
    %p73 = scmp.ne.s32.totalorder %s65, %s68
    %p74 = scmp.eq.s32.totalorder %s8, 0
    %p75 = por %p73, %p74
    %p76 = scmp.ne.s32.totalorder %s65, %s68
    %p77 = scmp.eq.s32.totalorder %s13, 1
    %p78 = por %p76, %p77
    %p79 = scmp.ne.s32.totalorder %s68, %s69
    %p80 = scmp.eq.s32.totalorder %s13, 0
    %p81 = por %p79, %p80
    %p82 = scmp.ne.s32.totalorder %s68, %s69
    %p83 = scmp.eq.s32.totalorder %s14, 1
    %p84 = por %p82, %p83
    %p86 = scmp.ne.s32.totalorder %s69, %s85
    %p87 = scmp.eq.s32.totalorder %s14, 0
    %p88 = por %p86, %p87
    %p89 = scmp.le.s32.totalorder 1, %s8
    %p90 = scmp.lt.s32.totalorder %s8, 3
    %p91 = pnand %p89, %p90
    %p92 = pneg %p91
    // Predicated region
    $region9: #{a_call__.1} parent=5 // pred_check
      _
    $region10: #{a_call__.1} parent=5 // pred_check_branch
      %94 = sbr.rel (%p91) target = $region12
    $region11: #{a_call__.1} parent=5 // pred_region
      %s95 = ssub.s32 %s8, 1
      // Predicated region
      $region13: #{a_call__.1} parent=11 // pred_check
        %p96 = pneg %p55
      $region14: #{a_call__.1} parent=11 // pred_check_branch
        %98 = sbr.rel (%p96) target = $region16
      $region15: #{a_call__.1} parent=11 // pred_region
        _
      $region16: #{a_call__.1} parent=11 // pred_fallthru
        _
    $region12: #{a_call__.1} parent=5 // pred_fallthru
      _
    %p99 = scmp.lt.s32.totalorder %s8, 2
    // Predicated region
    $region17: #{a_call__.1} parent=5 // pred_check
      %p100 = pneg %p99
    $region18: #{a_call__.1} parent=5 // pred_check_branch
      %102 = sbr.rel (%p100) target = $region20
    $region19: #{a_call__.1} parent=5 // pred_region
      // Predicated region
      $region21: #{a_call__.1} parent=19 // pred_check
        %p103 = pneg %p28
      $region22: #{a_call__.1} parent=19 // pred_check_branch
        %105 = sbr.rel (%p103) target = $region24
      $region23: #{a_call__.1} parent=19 // pred_region
        %p106 = scmp.lt.s32.totalorder %s8, 1
        %s107 = scalar_select %p106, %s8, 1
        %s108 = smul.addr %s107, 2
        %s109 = smul.addr %s108, 4
        %s110 = scalar_lea.vmem %s0, %s109
      $region24: #{a_call__.1} parent=19 // pred_fallthru
        _
    $region20: #{a_call__.1} parent=5 // pred_fallthru
      _
    %p111 = scmp.le.s32.totalorder 1, %s8
    %p112 = scmp.lt.s32.totalorder %s8, 3
    %p113 = pnand %p111, %p112
    %p114 = pneg %p113
    // Predicated region
    $region25: #{a_call__.1} parent=5 // pred_check
      _
    $region26: #{a_call__.1} parent=5 // pred_check_branch
      %116 = sbr.rel (%p113) target = $region28
    $region27: #{a_call__.1} parent=5 // pred_region
      %s117 = ssub.s32 %s8, 1
      %p118 = scmp.lt.s32.totalorder %s13, 1
      %s119 = scalar_select %p118, %s13, 1
      %s120 = smul.addr %s119, 2
      %s121 = smul.addr %s120, 4
      %s122 = scalar_lea.vmem %s0, %s121
      %p123 = pneg %p34
      %p124 = pneg %p31
      %p125 = pneg %p55
      %p126 = pneg %p52
      %p127 = pneg %p81
      %p128 = pneg %p78
      %p129 = scmp.lt.s32.totalorder %s13, 1
      %s130 = scalar_select %p129, %s13, 1
      %s131 = smul.addr %s130, 2
      %s132 = smul.addr %s131, 4
      %s133 = scalar_lea.vmem %s2, %s132
      %p134 = scmp.lt.s32.totalorder %s13, 1
      %s135 = scalar_select %p134, %s13, 1
      %s136 = smul.addr %s135, 2
      %s137 = smul.addr %s136, 4
      %s138 = scalar_lea.vmem %s0, %s137
      %p139 = scmp.lt.s32.totalorder %s13, 1
      %s140 = scalar_select %p139, %s13, 1
      %s141 = smul.addr %s140, 2
      %s142 = smul.addr %s141, 4
      %s143 = scalar_lea.vmem %s2, %s142
      %v145 = vld [vmem:[%s138] sm:$0xff]
      %v147 = vcombine.high %v145, %v145
      %v149 = vpack.c.bf16 %v145, %v145
      %v150 = vpack.c.bf16 %v147, %v147
      %v153 = vcombine.low %v149, %v150
      %v155 = vunpack.c.l.s4 1983009808
      %v156 = vunpack.c.0.s8 %v155
      %v157 = vlaneseq
      %v158 = vshrl.u32 %v157, 7
      %v159 = vsub.s32 %v156, %v158
      %v160 = vrot.slane %v153, %v159
      %162 = vst [vmem:[#allocation2] sm:$0xf] %v160
      %163 = vst [vmem:[#allocation2 + $0x4] sm:$0x3] 0
      %v164 = vld [vmem:[#allocation2] sm:$0x3]
      %165 = vst [vmem:[#allocation3] sm:$0x3] %v164
      %v166 = vld [vmem:[#allocation2] sm:$0xf]
      %v168 = vcombine.low %v166, %v166
      %v170 = vunpack.c.l.s4 1983009808
      %v171 = vunpack.c.0.s8 %v170
      %v172 = vlaneseq
      %v173 = vshrl.u32 %v172, 7
      %v174 = vsub.s32 %v171, %v173
      %v175 = vrot.slane %v168, %v174
      %176 = vrot.lane.b32.xlu0 %v175, 127
      %v177 = vpop.permute.xlu0 %176
      %v178 = vrot.slane %v177, 4
      %vm179 = vcmask 1039360
      %v180 = vsel %vm179, %v177, %v178
      %182 = vst [vmem:[#allocation3] sm:$0xc] %v180
      %v183 = vld [vmem:[#allocation2] sm:$0xf]
      %v186 = vunpack.c.l.s4 1983009808
      %v187 = vunpack.c.0.s8 %v186
      %v188 = vlaneseq
      %v189 = vshrl.u32 %v188, 7
      %v190 = vsub.s32 %v187, %v189
      %v191 = vrot.slane %v183, %v190
      %192 = vrot.lane.b32.xlu0 %v191, 126
      %v193 = vpop.permute.xlu0 %192
      %v194 = vrot.slane %v193, 4
      %vm195 = vcmask 1031168
      %v196 = vsel %vm195, %v193, %v194
      %198 = vst [vmem:[#allocation3 + $0x4] sm:$0x3] %v196
      %v199 = vld [vmem:[#allocation2] sm:$0xf]
      %v201 = vcombine.low %v199, %v199
      %v203 = vunpack.c.l.s4 1983009808
      %v204 = vunpack.c.0.s8 %v203
      %v205 = vlaneseq
      %v206 = vshrl.u32 %v205, 7
      %v207 = vsub.s32 %v204, %v206
      %v208 = vrot.slane %v201, %v207
      %209 = vrot.lane.b32.xlu0 %v208, 112
      %v210 = vpop.permute.xlu0 %209
      %v211 = vrot.slane %v210, 4
      %vm212 = vcmask 916480
      %v213 = vsel %vm212, %v210, %v211
      %215 = vst [vmem:[#allocation3 + $0x4] sm:$0xc] %v213
      %v216 = vld [vmem:[#allocation2] sm:$0xf]
      %v219 = vunpack.c.l.s4 1983009808
      %v220 = vunpack.c.0.s8 %v219
      %v221 = vlaneseq
      %v222 = vshrl.u32 %v221, 7
      %v223 = vsub.s32 %v220, %v222
      %v224 = vrot.slane %v216, %v223
      %225 = vrot.lane.b32.xlu0 %v224, 111
      %v226 = vpop.permute.xlu0 %225
      %v227 = vrot.slane %v226, 4
      %vm228 = vcmask 908288
      %v229 = vsel %vm228, %v226, %v227
      %231 = vst [vmem:[#allocation3 + $0x8] sm:$0x3] %v229
      %v232 = vld [vmem:[#allocation2] sm:$0xf]
      %v234 = vcombine.low %v232, %v232
      %v236 = vunpack.c.l.s4 1983009808
      %v237 = vunpack.c.0.s8 %v236
      %v238 = vlaneseq
      %v239 = vshrl.u32 %v238, 7
      %v240 = vsub.s32 %v237, %v239
      %v241 = vrot.slane %v234, %v240
      %242 = vrot.lane.b32.xlu0 %v241, 110
      %v243 = vpop.permute.xlu0 %242
      %v244 = vrot.slane %v243, 4
      %vm245 = vcmask 900096
      %v246 = vsel %vm245, %v243, %v244
      %248 = vst [vmem:[#allocation3 + $0x8] sm:$0xc] %v246
      %v249 = vld [vmem:[#allocation2] sm:$0xf]
      %v252 = vunpack.c.l.s4 1983009808
      %v253 = vunpack.c.0.s8 %v252
      %v254 = vlaneseq
      %v255 = vshrl.u32 %v254, 7
      %v256 = vsub.s32 %v253, %v255
      %v257 = vrot.slane %v249, %v256
      %258 = vrot.lane.b32.xlu0 %v257, 96
      %v259 = vpop.permute.xlu0 %258
      %v260 = vrot.slane %v259, 4
      %vm261 = vcmask 785408
      %v262 = vsel %vm261, %v259, %v260
      %264 = vst [vmem:[#allocation3 + $0xc] sm:$0x3] %v262
      %v265 = vld [vmem:[#allocation2] sm:$0xf]
      %v267 = vcombine.low %v265, %v265
      %v269 = vunpack.c.l.s4 1983009808
      %v270 = vunpack.c.0.s8 %v269
      %v271 = vlaneseq
      %v272 = vshrl.u32 %v271, 7
      %v273 = vsub.s32 %v270, %v272
      %v274 = vrot.slane %v267, %v273
      %275 = vrot.lane.b32.xlu0 %v274, 95
      %v276 = vpop.permute.xlu0 %275
      %v277 = vrot.slane %v276, 4
      %vm278 = vcmask 777216
      %v279 = vsel %vm278, %v276, %v277
      %281 = vst [vmem:[#allocation3 + $0xc] sm:$0xc] %v279
      %v282 = vld [vmem:[#allocation2] sm:$0xf]
      %v285 = vunpack.c.l.s4 1983009808
      %v286 = vunpack.c.0.s8 %v285
      %v287 = vlaneseq
      %v288 = vshrl.u32 %v287, 7
      %v289 = vsub.s32 %v286, %v288
      %v290 = vrot.slane %v282, %v289
      %291 = vrot.lane.b32.xlu0 %v290, 94
      %v292 = vpop.permute.xlu0 %291
      %v293 = vrot.slane %v292, 4
      %vm294 = vcmask 769024
      %v295 = vsel %vm294, %v292, %v293
      %297 = vst [vmem:[#allocation3 + $0x10] sm:$0x3] %v295
      %v298 = vld [vmem:[%s1] sm:$0xf]
      %v299 = vld [vmem:[#allocation3] sm:$0xf]
      %v300 = vld [vmem:[#allocation3 + $0x4] sm:$0xf]
      %v301 = vld [vmem:[#allocation3 + $0x8] sm:$0xf]
      %v302 = vld [vmem:[#allocation3 + $0xc] sm:$0xf]
      %v303 = vld [vmem:[#allocation3 + $0x10] sm:$0x3]
      %v309 = vunpack.c.l.b16 %v299
      %v310 = vunpack.c.l.b16 %v300
      %v311 = vunpack.c.l.b16 %v301
      %v312 = vunpack.c.l.b16 %v302
      %v313 = vunpack.c.l.b16 %v303
      %v314 = vpack.c.b16 %v310, %v309
      %v315 = vpack.c.b16 %v312, %v311
      %v316 = vpack.c.b16 %v313, %v313
      %vm319 = vcmask 293888
      %v321 = vsel %vm319, %v298, 0
      %vm323 = vcmask 1041408
      %v325 = vsel %vm323, %v316, 0
      %327 = vmatprep.subr.bf16.mxu0 0
      %328 = vmatpush1.bf16.msra.mxu0 0
      %329 = vmatprep.subr.bf16.mxu0 0
      %330 = vmatpush1.bf16.msra.mxu0 0
      %331 = vmatprep.subr.bf16.mxu0 0
      %332 = vmatpush1.bf16.msra.mxu0 0
      %333 = vmatprep.subr.bf16.mxu0 0
      %334 = vmatpush1.bf16.msra.mxu0 0
      %335 = vmatprep.subr.bf16.mxu0 0
      %336 = vmatpush1.bf16.msra.mxu0 0
      %337 = vmatprep.subr.bf16.mxu0 0
      %338 = vmatpush1.bf16.msra.mxu0 %v325
      %339 = vmatprep.subr.bf16.mxu0 0
      %340 = vmatpush1.bf16.msra.mxu0 %v315
      %341 = vmatprep.subr.bf16.mxu0 0
      %342 = vmatpush1.bf16.msra.mxu0 %v314
      %343 = vmatprep.subr.bf16.mxu0 0
      %344 = vmatpush2.bf16.msra.mxu0 0
      %345 = vmatprep.subr.bf16.mxu0 0
      %346 = vmatpush2.bf16.msra.mxu0 0
      %347 = vmatprep.subr.bf16.mxu0 0
      %348 = vmatpush2.bf16.msra.mxu0 0
      %349 = vmatprep.subr.bf16.mxu0 0
      %350 = vmatpush2.bf16.msra.mxu0 0
      %351 = vmatprep.subr.bf16.mxu0 0
      %352 = vmatpush2.bf16.msra.mxu0 0
      %353 = vmatprep.subr.bf16.mxu0 0
      %354 = vmatpush2.bf16.msra.mxu0 0
      %355 = vmatprep.subr.bf16.mxu0 0
      %356 = vmatpush2.bf16.msra.mxu0 0
      %357 = vmatprep.subr.bf16.mxu0 0
      %358 = vmatpush2.bf16.msra.mxu0 0
      %359 = vmatprep.mubr.bf16.mxu0 0
      %360 = vmatmul.mubr.bf16.gmra.mxu0 %v321
      %v361 = vpop.f32.mrf.mxu0
      %v362 = vadd.f32 0.0, %v361
      %v363 = vpop.f32.mrf.mxu0
      %v364 = vpop.f32.mrf.mxu0
      %v365 = vpop.f32.mrf.mxu0
      %366 = vdwg.mxu0
      %v367 = vpack.c.bf16 %v362, %v362
      %368 = vst [vmem:[%s143] sm:$0xf] %v367
      %v369 = vld [vmem:[#allocation2 + $0x2] sm:$0x3]
      %370 = vst [vmem:[#allocation3] sm:$0x3] %v369
      %v371 = vld [vmem:[#allocation2 + $0x2] sm:$0xf]
      %v373 = vcombine.low %v371, %v371
      %v375 = vunpack.c.l.s4 1983009808
      %v376 = vunpack.c.0.s8 %v375
      %v377 = vlaneseq
      %v378 = vshrl.u32 %v377, 7
      %v379 = vsub.s32 %v376, %v378
      %v380 = vrot.slane %v373, %v379
      %381 = vrot.lane.b32.xlu0 %v380, 127
      %v382 = vpop.permute.xlu0 %381
      %v383 = vrot.slane %v382, 4
      %v384 = vsel %vm179, %v382, %v383
      %386 = vst [vmem:[#allocation3] sm:$0xc] %v384
      %v387 = vld [vmem:[#allocation2 + $0x2] sm:$0xf]
      %v390 = vunpack.c.l.s4 1983009808
      %v391 = vunpack.c.0.s8 %v390
      %v392 = vlaneseq
      %v393 = vshrl.u32 %v392, 7
      %v394 = vsub.s32 %v391, %v393
      %v395 = vrot.slane %v387, %v394
      %396 = vrot.lane.b32.xlu0 %v395, 126
      %v397 = vpop.permute.xlu0 %396
      %v398 = vrot.slane %v397, 4
      %v399 = vsel %vm195, %v397, %v398
      %401 = vst [vmem:[#allocation3 + $0x4] sm:$0x3] %v399
      %v402 = vld [vmem:[#allocation2 + $0x2] sm:$0xf]
      %v404 = vcombine.low %v402, %v402
      %v406 = vunpack.c.l.s4 1983009808
      %v407 = vunpack.c.0.s8 %v406
      %v408 = vlaneseq
      %v409 = vshrl.u32 %v408, 7
      %v410 = vsub.s32 %v407, %v409
      %v411 = vrot.slane %v404, %v410
      %412 = vrot.lane.b32.xlu0 %v411, 112
      %v413 = vpop.permute.xlu0 %412
      %v414 = vrot.slane %v413, 4
      %v415 = vsel %vm212, %v413, %v414
      %417 = vst [vmem:[#allocation3 + $0x4] sm:$0xc] %v415
      %v418 = vld [vmem:[#allocation2 + $0x2] sm:$0xf]
      %v421 = vunpack.c.l.s4 1983009808
      %v422 = vunpack.c.0.s8 %v421
      %v423 = vlaneseq
      %v424 = vshrl.u32 %v423, 7
      %v425 = vsub.s32 %v422, %v424
      %v426 = vrot.slane %v418, %v425
      %427 = vrot.lane.b32.xlu0 %v426, 111
      %v428 = vpop.permute.xlu0 %427
      %v429 = vrot.slane %v428, 4
      %v430 = vsel %vm228, %v428, %v429
      %432 = vst [vmem:[#allocation3 + $0x8] sm:$0x3] %v430
      %v433 = vld [vmem:[#allocation2 + $0x2] sm:$0xf]
      %v435 = vcombine.low %v433, %v433
      %v437 = vunpack.c.l.s4 1983009808
      %v438 = vunpack.c.0.s8 %v437
      %v439 = vlaneseq
      %v440 = vshrl.u32 %v439, 7
      %v441 = vsub.s32 %v438, %v440
      %v442 = vrot.slane %v435, %v441
      %443 = vrot.lane.b32.xlu0 %v442, 110
      %v444 = vpop.permute.xlu0 %443
      %v445 = vrot.slane %v444, 4
      %v446 = vsel %vm245, %v444, %v445
      %448 = vst [vmem:[#allocation3 + $0x8] sm:$0xc] %v446
      %v449 = vld [vmem:[#allocation2 + $0x2] sm:$0xf]
      %v452 = vunpack.c.l.s4 1983009808
      %v453 = vunpack.c.0.s8 %v452
      %v454 = vlaneseq
      %v455 = vshrl.u32 %v454, 7
      %v456 = vsub.s32 %v453, %v455
      %v457 = vrot.slane %v449, %v456
      %458 = vrot.lane.b32.xlu0 %v457, 96
      %v459 = vpop.permute.xlu0 %458
      %v460 = vrot.slane %v459, 4
      %v461 = vsel %vm261, %v459, %v460
      %463 = vst [vmem:[#allocation3 + $0xc] sm:$0x3] %v461
      %v464 = vld [vmem:[#allocation2 + $0x2] sm:$0xf]
      %v466 = vcombine.low %v464, %v464
      %v468 = vunpack.c.l.s4 1983009808
      %v469 = vunpack.c.0.s8 %v468
      %v470 = vlaneseq
      %v471 = vshrl.u32 %v470, 7
      %v472 = vsub.s32 %v469, %v471
      %v473 = vrot.slane %v466, %v472
      %474 = vrot.lane.b32.xlu0 %v473, 95
      %v475 = vpop.permute.xlu0 %474
      %v476 = vrot.slane %v475, 4
      %v477 = vsel %vm278, %v475, %v476
      %479 = vst [vmem:[#allocation3 + $0xc] sm:$0xc] %v477
      %v480 = vld [vmem:[#allocation2 + $0x2] sm:$0xf]
      %v483 = vunpack.c.l.s4 1983009808
      %v484 = vunpack.c.0.s8 %v483
      %v485 = vlaneseq
      %v486 = vshrl.u32 %v485, 7
      %v487 = vsub.s32 %v484, %v486
      %v488 = vrot.slane %v480, %v487
      %489 = vrot.lane.b32.xlu0 %v488, 94
      %v490 = vpop.permute.xlu0 %489
      %v491 = vrot.slane %v490, 4
      %v492 = vsel %vm294, %v490, %v491
      %494 = vst [vmem:[#allocation3 + $0x10] sm:$0x3] %v492
      %v495 = vld [vmem:[%s1] sm:$0xf]
      %v496 = vld [vmem:[#allocation3] sm:$0xf]
      %v497 = vld [vmem:[#allocation3 + $0x4] sm:$0xf]
      %v498 = vld [vmem:[#allocation3 + $0x8] sm:$0xf]
      %v499 = vld [vmem:[#allocation3 + $0xc] sm:$0xf]
      %v500 = vld [vmem:[#allocation3 + $0x10] sm:$0x3]
      %v506 = vunpack.c.l.b16 %v496
      %v507 = vunpack.c.l.b16 %v497
      %v508 = vunpack.c.l.b16 %v498
      %v509 = vunpack.c.l.b16 %v499
      %v510 = vunpack.c.l.b16 %v500
      %v511 = vpack.c.b16 %v507, %v506
      %v512 = vpack.c.b16 %v509, %v508
      %v513 = vpack.c.b16 %v510, %v510
      %v517 = vsel %vm319, %v495, 0
      %v520 = vsel %vm323, %v513, 0
      %522 = vmatprep.subr.bf16.mxu0 0
      %523 = vmatpush1.bf16.msra.mxu0 0
      %524 = vmatprep.subr.bf16.mxu0 0
      %525 = vmatpush1.bf16.msra.mxu0 0
      %526 = vmatprep.subr.bf16.mxu0 0
      %527 = vmatpush1.bf16.msra.mxu0 0
      %528 = vmatprep.subr.bf16.mxu0 0
      %529 = vmatpush1.bf16.msra.mxu0 0
      %530 = vmatprep.subr.bf16.mxu0 0
      %531 = vmatpush1.bf16.msra.mxu0 0
      %532 = vmatprep.subr.bf16.mxu0 0
      %533 = vmatpush1.bf16.msra.mxu0 %v520
      %534 = vmatprep.subr.bf16.mxu0 0
      %535 = vmatpush1.bf16.msra.mxu0 %v512
      %536 = vmatprep.subr.bf16.mxu0 0
      %537 = vmatpush1.bf16.msra.mxu0 %v511
      %538 = vmatprep.subr.bf16.mxu0 0
      %539 = vmatpush2.bf16.msra.mxu0 0
      %540 = vmatprep.subr.bf16.mxu0 0
      %541 = vmatpush2.bf16.msra.mxu0 0
      %542 = vmatprep.subr.bf16.mxu0 0
      %543 = vmatpush2.bf16.msra.mxu0 0
      %544 = vmatprep.subr.bf16.mxu0 0
      %545 = vmatpush2.bf16.msra.mxu0 0
      %546 = vmatprep.subr.bf16.mxu0 0
      %547 = vmatpush2.bf16.msra.mxu0 0
      %548 = vmatprep.subr.bf16.mxu0 0
      %549 = vmatpush2.bf16.msra.mxu0 0
      %550 = vmatprep.subr.bf16.mxu0 0
      %551 = vmatpush2.bf16.msra.mxu0 0
      %552 = vmatprep.subr.bf16.mxu0 0
      %553 = vmatpush2.bf16.msra.mxu0 0
      %554 = vmatprep.mubr.bf16.mxu0 0
      %555 = vmatmul.mubr.bf16.gmra.mxu0 %v517
      %v556 = vpop.f32.mrf.mxu0
      %v557 = vadd.f32 0.0, %v556
      %v558 = vpop.f32.mrf.mxu0
      %v559 = vpop.f32.mrf.mxu0
      %v560 = vpop.f32.mrf.mxu0
      %561 = vdwg.mxu0
      %v562 = vpack.c.bf16 %v557, %v557
      %563 = vst [vmem:[%s143 + $0x4] sm:$0xf] %v562
      %p564 = scmp.lt.s32.totalorder %s13, 1
      %s565 = scalar_select %p564, %s13, 1
      %s566 = smul.addr %s565, 2
      %s567 = smul.addr %s566, 4
      %s568 = scalar_lea.vmem %s2, %s567
      // Predicated region
      $region29: #{a_call__.1} parent=27 // pred_check
        %p569 = pneg %p78
      $region30: #{a_call__.1} parent=27 // pred_check_branch
        %571 = sbr.rel (%p569) target = $region32
      $region31: #{a_call__.1} parent=27 // pred_region
        _
      $region32: #{a_call__.1} parent=27 // pred_fallthru
        _
    $region28: #{a_call__.1} parent=5 // pred_fallthru
      _
    %p572 = scmp.le.s32.totalorder 2, %s8
    // Predicated region
    $region33: #{a_call__.1} parent=5 // pred_check
      %p573 = pneg %p572
    $region34: #{a_call__.1} parent=5 // pred_check_branch
      %575 = sbr.rel (%p573) target = $region36
    $region35: #{a_call__.1} parent=5 // pred_region
      %s576 = ssub.s32 %s8, 2
      // Predicated region
      $region37: #{a_call__.1} parent=35 // pred_check
        %p577 = pneg %p84
      $region38: #{a_call__.1} parent=35 // pred_check_branch
        %579 = sbr.rel (%p577) target = $region40
      $region39: #{a_call__.1} parent=35 // pred_region
        %p580 = scmp.lt.s32.totalorder %s14, 1
        %s581 = scalar_select %p580, %s14, 1
        %s582 = smul.addr %s581, 2
        %s583 = smul.addr %s582, 4
        %s584 = scalar_lea.vmem %s2, %s583
      $region40: #{a_call__.1} parent=35 // pred_fallthru
        _
    $region36: #{a_call__.1} parent=5 // pred_fallthru
      _
  $region6: #{a_call__.1} parent=0 // loop_footer
    %s12 = sadd.s32 1, %s8
  $region7: #{a_call__.1} parent=0 // loop_footer_branch
    %7 = sbr.rel target = $region3
  $region8: #{a_call__.1} parent=0 // loop_exit
    _

</llo_original>
